<compile_context>
chip_gen: v7x
topology: tpu7x:2x2x1
jax: 0.10.0
libtpu: 0.0.40
codegen_flags: <defaults>
</compile_context>

<pallas_src>
import functools

import jax
import jax.numpy as jnp
from jax.experimental import pallas as pl
from jax.experimental.pallas import tpu as pltpu

EMBED = 64          # embedding_size in the PyTorch module
DEFAULT_TILE_B = 512  # batch rows per grid step (sweep 512-2048 on big batches)


def _round_up(n, m):
    return ((n + m - 1) // m) * m


def _resdynmlp_kernel(x_ref, w_ref, o_ref, *, in_pad, w_pad):
    """x_ref: (TILE_B, in_pad) f32; w_ref: packed bf16 slab; o_ref: (TILE_B, w_pad) f32."""
    # bf16 MXU inputs, f32 accumulation.
    x = x_ref[...].astype(jnp.bfloat16)

    # Static slices into the resident weight slab (all row offsets are 8-aligned).
    w1 = w_ref[0:in_pad, :]                              # [in_pad, w_pad]
    w2 = w_ref[in_pad:in_pad + w_pad, :]                 # [w_pad,  w_pad]
    w3 = w_ref[in_pad + w_pad:in_pad + 2 * w_pad, :]     # [w_pad,  w_pad]
    b = w_ref[in_pad + 2 * w_pad:in_pad + 2 * w_pad + 8, :].astype(jnp.float32)
    b1, b2, b3 = b[0:1, :], b[1:2, :], b[2:3, :]

    # Layer 1: Linear + ReLU
    h1 = jnp.dot(x, w1, preferred_element_type=jnp.float32) + b1
    h1 = jnp.maximum(h1, 0.0).astype(jnp.bfloat16)

    # Layer 2: Linear + ReLU
    h2 = jnp.dot(h1, w2, preferred_element_type=jnp.float32) + b2
    h2 = jnp.maximum(h2, 0.0).astype(jnp.bfloat16)

    # Layer 3: Linear + Tanh, then * 3  (padded output columns stay exactly 0 -> tanh(0)*3 = 0)
    h3 = jnp.dot(h2, w3, preferred_element_type=jnp.float32) + b3
    o_ref[...] = (jnp.tanh(h3) * 3.0).astype(o_ref.dtype)


def res_dyn_mlp(x, params, *, tile_b=DEFAULT_TILE_B):
    """x: [B, input_dim] float32. params: dict w1,b1,w2,b2,w3,b3 (w's are [in, out])."""
    w1, b1 = params["w1"], params["b1"]
    w2, b2 = params["w2"], params["b2"]
    w3, b3 = params["w3"], params["b3"]

    B, in_dim = x.shape
    out_dim = w3.shape[1]

    # Padded dimensions: lane-dense (128-multiple) feature width, 8-aligned input width.
    w_pad = max(128, _round_up(out_dim, 128))   # hidden/output width inside the kernel
    in_pad = _round_up(in_dim, 8)

    # Batch tiling.
    tile = _round_up(min(tile_b, _round_up(B, 8)), 8)
    nb = pl.cdiv(B, tile)
    b_pad = nb * tile

    # Zero-pad x (extra rows/cols contribute 0 through zero-padded weights).
    x_p = jnp.zeros((b_pad, in_pad), x.dtype).at[:B, :in_dim].set(x)

    # Pack all weights + biases into a single bf16 slab (one DMA, VMEM-resident).
    #   rows [0, in_pad)                     : W1 (zero-padded)
    #   rows [in_pad, in_pad+w_pad)          : W2 (zero-padded)
    #   rows [in_pad+w_pad, in_pad+2*w_pad)  : W3 (zero-padded)
    #   rows [in_pad+2*w_pad, +8)            : b1, b2, b3 (one row each, rest zero)
    slab = jnp.zeros((in_pad + 2 * w_pad + 8, w_pad), jnp.float32)
    slab = slab.at[0:in_dim, 0:EMBED].set(w1)
    slab = slab.at[in_pad:in_pad + EMBED, 0:EMBED].set(w2)
    slab = slab.at[in_pad + w_pad:in_pad + w_pad + EMBED, 0:out_dim].set(w3)
    boff = in_pad + 2 * w_pad
    slab = slab.at[boff + 0, 0:EMBED].set(b1)
    slab = slab.at[boff + 1, 0:EMBED].set(b2)
    slab = slab.at[boff + 2, 0:out_dim].set(b3)
    slab = slab.astype(jnp.bfloat16)

    kernel = functools.partial(_resdynmlp_kernel, in_pad=in_pad, w_pad=w_pad)

    out = pl.pallas_call(
        kernel,
        out_shape=jax.ShapeDtypeStruct((b_pad, w_pad), x.dtype),
        grid=(nb,),
        in_specs=[
            pl.BlockSpec((tile, in_pad), lambda i: (i, 0)),      # x: new tile per step
            pl.BlockSpec(slab.shape, lambda i: (0, 0)),          # weights: fetched once, resident
        ],
        out_specs=pl.BlockSpec((tile, w_pad), lambda i: (i, 0)),  # lane-dense (128-wide) output
        compiler_params=pltpu.CompilerParams(
            dimension_semantics=("parallel",),                    # megacore split on v7x
        ),
    )(x_p, slab)

    return out[:B, :out_dim]


def init_params(key, input_dim, output_dim):
    """Deterministic init mimicking nn.Linear's uniform bounds (values arbitrary but fixed)."""
    ks = jax.random.split(key, 6)

    def linear(kw, kb, fan_in, fan_out):
        bound = 1.0 / jnp.sqrt(fan_in)
        # stored as [in, out] (transpose of torch's [out, in]) so kernel uses x @ W
        w = jax.random.uniform(kw, (fan_in, fan_out), jnp.float32, -bound, bound)
        b = jax.random.uniform(kb, (fan_out,), jnp.float32, -bound, bound)
        return w, b

    w1, b1 = linear(ks[0], ks[1], input_dim, EMBED)
    w2, b2 = linear(ks[2], ks[3], EMBED, EMBED)
    w3, b3 = linear(ks[4], ks[5], EMBED, output_dim)
    return {"w1": w1, "b1": b1, "w2": w2, "b2": b2, "w3": w3, "b3": b3}


def reference(x, p):
    """Pure-JAX reference mirroring the kernel's precision (bf16 MXU inputs, f32 accumulation)."""
    bf = lambda a: a.astype(jnp.bfloat16).astype(jnp.float32)
    dot = lambda a, b: jnp.dot(a, b, precision=jax.lax.Precision.HIGHEST)
    h1 = jnp.maximum(dot(bf(x), bf(p["w1"])) + bf(p["b1"]), 0.0)
    h2 = jnp.maximum(dot(bf(h1), bf(p["w2"])) + bf(p["b2"]), 0.0)
    return jnp.tanh(dot(bf(h2), bf(p["w3"])) + bf(p["b3"])) * 3.0


if __name__ == "__main__":
    key = jax.random.PRNGKey(0)
    kx, kp = jax.random.split(key)

    batch, input_dim, output_dim = 256, 16, 8
    x = jax.random.normal(kx, (batch, input_dim), dtype=jnp.float32)
    params = init_params(kp, input_dim, output_dim)

    # tile_b=128 -> grid=(2,): exercises the pipelined multi-step path at a small batch.
    out = res_dyn_mlp(x, params, tile_b=128)
    out = jax.block_until_ready(out)

    ref = reference(x, params)
    assert out.shape == (batch, output_dim)
    max_err = float(jnp.max(jnp.abs(out - ref)))
    assert jnp.allclose(out, ref, atol=1e-3, rtol=1e-3), f"mismatch vs reference (max_err={max_err})"

    print("KERNEL_OK")
</pallas_src>

<mosaic_0001>
module attributes {stable_mosaic.version = 11 : i64} {
  func.func @_resdynmlp_kernel(%arg0: i32, %arg1: memref<128x16xf32, #tpu.memory_space<vmem>>, %arg2: memref<280x128xbf16, #tpu.memory_space<vmem>>, %arg3: memref<128x128xf32, #tpu.memory_space<vmem>>) attributes {dimension_semantics = [#tpu.dimension_semantics<parallel>], iteration_bounds = array<i64: 2>, scalar_prefetch = 0 : i64, scratch_operands = 0 : i64, tpu.core_type = #tpu.core_type<tc>, window_params = [{transform_indices = @transform_0, window_bounds = array<i64: 128, 16>}, {pipeline_mode = #tpu.pipeline_mode<synchronous>, transform_indices = @transform_1, window_bounds = array<i64: 280, 128>}, {transform_indices = @transform_2, window_bounds = array<i64: 128, 128>}]} {
    %c0 = arith.constant 0 : index
    %c0_0 = arith.constant 0 : index
    %0 = vector.load %arg1[%c0, %c0_0] : memref<128x16xf32, #tpu.memory_space<vmem>>, vector<128x16xf32>
    %1 = arith.truncf %0 : vector<128x16xf32> to vector<128x16xbf16>
    %c0_1 = arith.constant 0 : index
    %c0_2 = arith.constant 0 : index
    %2 = vector.load %arg2[%c0_1, %c0_2] : memref<280x128xbf16, #tpu.memory_space<vmem>>, vector<16x128xbf16>
    %c16 = arith.constant 16 : index
    %c0_3 = arith.constant 0 : index
    %3 = vector.load %arg2[%c16, %c0_3] : memref<280x128xbf16, #tpu.memory_space<vmem>>, vector<128x128xbf16>
    %c144 = arith.constant 144 : index
    %c0_4 = arith.constant 0 : index
    %4 = vector.load %arg2[%c144, %c0_4] : memref<280x128xbf16, #tpu.memory_space<vmem>>, vector<128x128xbf16>
    %c272 = arith.constant 272 : index
    %c0_5 = arith.constant 0 : index
    %5 = vector.load %arg2[%c272, %c0_5] : memref<280x128xbf16, #tpu.memory_space<vmem>>, vector<8x128xbf16>
    %6 = arith.extf %5 : vector<8x128xbf16> to vector<8x128xf32>
    %7 = vector.extract_strided_slice %6 {offsets = [0, 0], sizes = [1, 128], strides = [1, 1]} : vector<8x128xf32> to vector<1x128xf32>
    %8 = vector.extract_strided_slice %6 {offsets = [1, 0], sizes = [1, 128], strides = [1, 1]} : vector<8x128xf32> to vector<1x128xf32>
    %9 = vector.extract_strided_slice %6 {offsets = [2, 0], sizes = [1, 128], strides = [1, 1]} : vector<8x128xf32> to vector<1x128xf32>
    %cst = arith.constant dense<0.000000e+00> : vector<128x128xf32>
    %10 = tpu.matmul %1, %2, %cst {dimension_numbers = #tpu.dot_dimension_numbers<[1], [0], [0], [1], [0, 0, 1, 1], [], []>} : vector<128x16xbf16>, vector<16x128xbf16>, vector<128x128xf32> -> vector<128x128xf32>
    %11 = vector.broadcast %7 : vector<1x128xf32> to vector<128x128xf32>
    %12 = arith.addf %10, %11 : vector<128x128xf32>
    %cst_6 = arith.constant 0.000000e+00 : f32
    %13 = vector.broadcast %cst_6 : f32 to vector<128x128xf32>
    %14 = arith.maximumf %12, %13 : vector<128x128xf32>
    %15 = arith.truncf %14 : vector<128x128xf32> to vector<128x128xbf16>
    %cst_7 = arith.constant dense<0.000000e+00> : vector<128x128xf32>
    %16 = tpu.matmul %15, %3, %cst_7 {dimension_numbers = #tpu.dot_dimension_numbers<[1], [0], [0], [1], [0, 0, 1, 1], [], []>} : vector<128x128xbf16>, vector<128x128xbf16>, vector<128x128xf32> -> vector<128x128xf32>
    %17 = vector.broadcast %8 : vector<1x128xf32> to vector<128x128xf32>
    %18 = arith.addf %16, %17 : vector<128x128xf32>
    %cst_8 = arith.constant 0.000000e+00 : f32
    %19 = vector.broadcast %cst_8 : f32 to vector<128x128xf32>
    %20 = arith.maximumf %18, %19 : vector<128x128xf32>
    %21 = arith.truncf %20 : vector<128x128xf32> to vector<128x128xbf16>
    %cst_9 = arith.constant dense<0.000000e+00> : vector<128x128xf32>
    %22 = tpu.matmul %21, %4, %cst_9 {dimension_numbers = #tpu.dot_dimension_numbers<[1], [0], [0], [1], [0, 0, 1, 1], [], []>} : vector<128x128xbf16>, vector<128x128xbf16>, vector<128x128xf32> -> vector<128x128xf32>
    %23 = vector.broadcast %9 : vector<1x128xf32> to vector<128x128xf32>
    %24 = arith.addf %22, %23 : vector<128x128xf32>
    %25 = math.tanh %24 : vector<128x128xf32>
    %cst_10 = arith.constant 3.000000e+00 : f32
    %26 = vector.broadcast %cst_10 : f32 to vector<128x128xf32>
    %27 = arith.mulf %25, %26 : vector<128x128xf32>
    %c0_11 = arith.constant 0 : index
    %c0_12 = arith.constant 0 : index
    %28 = vector.load %arg3[%c0_11, %c0_12] : memref<128x128xf32, #tpu.memory_space<vmem>>, vector<128x128xf32>
    tpu.vector_store %arg3[%c0_11, %c0_12], %27 {strides = array<i32>} : memref<128x128xf32, #tpu.memory_space<vmem>>, vector<128x128xf32>,
    return
  }
  func.func @transform_0(%arg0: i32) -> (i32, i32) {
    %c0_i32 = arith.constant 0 : i32
    %c0_i32_0 = arith.constant 0 : i32
    return %arg0, %c0_i32 : i32, i32
  }
  func.func @transform_1(%arg0: i32) -> (i32, i32) {
    %c0_i32 = arith.constant 0 : i32
    %c0_i32_0 = arith.constant 0 : i32
    %c0_i32_1 = arith.constant 0 : i32
    return %c0_i32, %c0_i32_0 : i32, i32
  }
  func.func @transform_2(%arg0: i32) -> (i32, i32) {
    %c0_i32 = arith.constant 0 : i32
    %c0_i32_0 = arith.constant 0 : i32
    return %arg0, %c0_i32 : i32, i32
  }
}

</mosaic_0001>

<llo_original>
// kernel: tpu_custom_call.1
$region0: #{tpu_custom_call.1}
  #allocation0 [shape = 'u32[]', space=smem, size = 0x4, offset = 0x4, fixed_abs, tag = 'smem constant byte address 0x4 - core index']
  #allocation1 [shape = 'u32[144,128]{1,0:T(1,128)}', space=vmem, size = 0x12000, scoped, tag = 'internal scratch']
  %s0 = inlined_call_operand.vmem [shape: f32[256,16], index: 0, kind: input, shape index: {}]
  %s1 = inlined_call_operand.vmem [shape: bf16[280,128], index: 1, kind: input, shape index: {}]
  %s2 = inlined_call_operand.hbm [shape: f32[256,128], index: 2, kind: output, shape index: {}]
  %s3 = sld [smem:[#allocation0]]
  $region41: #{tpu_custom_call.1} parent=0
    _
  %s5 = ssub.s32 1, %s3
  %s6 = scalar_select 0, %s5, %s3
  $region1: #{tpu_custom_call.1} parent=0
    #allocation2 [shape = 'u8[131072]{0}', space=vmem, size = 0x20000, scoped, tag = 'output window, operand 0']
    #allocation3 [shape = 's32[2]{0}', space=sflag, size = 0x8, scoped, tag = 'scoped memory for tpu_custom_call.1']
    %7 = vsyncpa [#allocation3], 0
    %s8 = scalar_lea.sflag [#allocation3], 1
    %9 = vsyncpa %s8, 0
    loop: start=0, step=1, limit=4
    $region2: #{tpu_custom_call.1} parent=1 // loop_pre_header
      _
    $region3: #{tpu_custom_call.1} parent=1 // loop_header
      %s11 = sphi 0, %s15
      %p12 = scmp.ge.s32.totalorder %s11, 4
      %s21 = sphi 0, %s23
      %s24 = sphi 0, %s21
      %s25 = sphi 0, %s24
      %s41 = sphi 0, %s25
      %s45 = sphi 0, %s45
      %s47 = sphi 0, %s45
      %s48 = sphi 0, %s47
      %s62 = sphi 0, %s48
      %s68 = sphi 0, %s70
      %s71 = sphi 0, %s68
      %s72 = sphi 0, %s71
      %s88 = sphi 0, %s72
    $region4: #{tpu_custom_call.1} parent=1 // loop_header_branch
      %14 = sbr.rel (%p12) target = $region8
    $region5: #{tpu_custom_call.1} parent=1 // loop_body
      %s16 = ssub.s32 %s11, 1
      %s17 = ssub.s32 %s11, 2
      %s18 = sadd.s32 %s11, 1
      %s19 = ssub.s32 %s11, %s18
      %p20 = scmp.eq.s32.totalorder %s19, 0
      %s22 = sadd.s32 %s21, 1
      %s23 = scalar_select %p20, %s21, %s22
      %p26 = pneg %p20
      %p27 = scmp.eq.s32.totalorder %s11, 1
      %p28 = por %p26, %p27
      %p29 = scmp.ne.s32.totalorder %s21, %s24
      %p30 = scmp.eq.s32.totalorder %s11, 0
      %p31 = por %p29, %p30
      %p32 = scmp.ne.s32.totalorder %s21, %s24
      %p33 = scmp.eq.s32.totalorder %s16, 1
      %p34 = por %p32, %p33
      %p35 = scmp.ne.s32.totalorder %s24, %s25
      %p36 = scmp.eq.s32.totalorder %s16, 0
      %p37 = por %p35, %p36
      %p38 = scmp.ne.s32.totalorder %s24, %s25
      %p39 = scmp.eq.s32.totalorder %s17, 1
      %p40 = por %p38, %p39
      %p42 = scmp.ne.s32.totalorder %s25, %s41
      %p43 = scmp.eq.s32.totalorder %s17, 0
      %p44 = por %p42, %p43
      %s46 = sadd.s32 %s45, 1
      %p49 = scmp.eq.s32.totalorder %s11, 1
      %p50 = scmp.ne.s32.totalorder %s45, %s47
      %p51 = scmp.eq.s32.totalorder %s11, 0
      %p52 = por %p50, %p51
      %p53 = scmp.ne.s32.totalorder %s45, %s47
      %p54 = scmp.eq.s32.totalorder %s16, 1
      %p55 = por %p53, %p54
      %p56 = scmp.ne.s32.totalorder %s47, %s48
      %p57 = scmp.eq.s32.totalorder %s16, 0
      %p58 = por %p56, %p57
      %p59 = scmp.ne.s32.totalorder %s47, %s48
      %p60 = scmp.eq.s32.totalorder %s17, 1
      %p61 = por %p59, %p60
      %p63 = scmp.ne.s32.totalorder %s48, %s62
      %p64 = scmp.eq.s32.totalorder %s17, 0
      %p65 = por %p63, %p64
      %s66 = ssub.s32 %s11, %s18
      %p67 = scmp.eq.s32.totalorder %s66, 0
      %s69 = sadd.s32 %s68, 1
      %s70 = scalar_select %p67, %s68, %s69
      %p73 = pneg %p67
      %p74 = scmp.eq.s32.totalorder %s11, 1
      %p75 = por %p73, %p74
      %p76 = scmp.ne.s32.totalorder %s68, %s71
      %p77 = scmp.eq.s32.totalorder %s11, 0
      %p78 = por %p76, %p77
      %p79 = scmp.ne.s32.totalorder %s68, %s71
      %p80 = scmp.eq.s32.totalorder %s16, 1
      %p81 = por %p79, %p80
      %p82 = scmp.ne.s32.totalorder %s71, %s72
      %p83 = scmp.eq.s32.totalorder %s16, 0
      %p84 = por %p82, %p83
      %p85 = scmp.ne.s32.totalorder %s71, %s72
      %p86 = scmp.eq.s32.totalorder %s17, 1
      %p87 = por %p85, %p86
      %p89 = scmp.ne.s32.totalorder %s72, %s88
      %p90 = scmp.eq.s32.totalorder %s17, 0
      %p91 = por %p89, %p90
      %p92 = scmp.le.s32.totalorder 1, %s11
      %p93 = scmp.lt.s32.totalorder %s11, 3
      %p94 = pnand %p92, %p93
      %p95 = pneg %p94
      // Predicated region
      $region9: #{tpu_custom_call.1} parent=5 // pred_check
        _
      $region10: #{tpu_custom_call.1} parent=5 // pred_check_branch
        %97 = sbr.rel (%p94) target = $region12
      $region11: #{tpu_custom_call.1} parent=5 // pred_region
        %s98 = ssub.s32 %s11, 1
        // Predicated region
        $region13: #{tpu_custom_call.1} parent=11 // pred_check
          %p99 = pneg %p58
        $region14: #{tpu_custom_call.1} parent=11 // pred_check_branch
          %101 = sbr.rel (%p99) target = $region16
        $region15: #{tpu_custom_call.1} parent=11 // pred_region
          _
        $region16: #{tpu_custom_call.1} parent=11 // pred_fallthru
          _
      $region12: #{tpu_custom_call.1} parent=5 // pred_fallthru
        _
      %p102 = scmp.lt.s32.totalorder %s11, 2
      // Predicated region
      $region17: #{tpu_custom_call.1} parent=5 // pred_check
        %p103 = pneg %p102
      $region18: #{tpu_custom_call.1} parent=5 // pred_check_branch
        %105 = sbr.rel (%p103) target = $region20
      $region19: #{tpu_custom_call.1} parent=5 // pred_region
        // Predicated region
        $region21: #{tpu_custom_call.1} parent=19 // pred_check
          %p106 = pneg %p31
        $region22: #{tpu_custom_call.1} parent=19 // pred_check_branch
          %108 = sbr.rel (%p106) target = $region24
        $region23: #{tpu_custom_call.1} parent=19 // pred_region
          %s109 = smul.u32 16, %s11
          %p110 = scmp.lt.s32.totalorder %s109, 31
          %s111 = scalar_select %p110, %s109, 31
          %s112 = smul.addr %s111, 8
          %s113 = scalar_lea.vmem %s0, %s112
          %s114 = smul.u32 16, %s11
        $region24: #{tpu_custom_call.1} parent=19 // pred_fallthru
          _
      $region20: #{tpu_custom_call.1} parent=5 // pred_fallthru
        _
      %p115 = scmp.le.s32.totalorder 1, %s11
      %p116 = scmp.lt.s32.totalorder %s11, 3
      %p117 = pnand %p115, %p116
      %p118 = pneg %p117
      // Predicated region
      $region25: #{tpu_custom_call.1} parent=5 // pred_check
        _
      $region26: #{tpu_custom_call.1} parent=5 // pred_check_branch
        %120 = sbr.rel (%p117) target = $region28
      $region27: #{tpu_custom_call.1} parent=5 // pred_region
        %s121 = ssub.s32 %s11, 1
        %s122 = smul.u32 16, %s16
        %p123 = scmp.lt.s32.totalorder %s122, 31
        %s124 = scalar_select %p123, %s122, 31
        %s125 = smul.addr %s124, 8
        %s126 = scalar_lea.vmem %s0, %s125
        %p127 = pneg %p37
        %p128 = pneg %p34
        %p129 = pneg %p58
        %p130 = pneg %p55
        %p131 = pneg %p84
        %p132 = pneg %p81
        %s133 = sand.u32 %s71, 1
        %s134 = scalar_lea.sflag [#allocation3], %s133
        %s135 = sand.u32 %s71, 1
        %s136 = smul.addr %s135, 128
        %s137 = scalar_lea.vmem [#allocation2], %s136
        %s138 = smul.u32 16, %s16
        %p139 = scmp.lt.s32.totalorder %s138, 31
        %s140 = scalar_select %p139, %s138, 31
        %s141 = smul.addr %s140, 8
        %s142 = scalar_lea.vmem %s0, %s141
        %s143 = smul.u32 16, %s16
        %s144 = smul.u32 16, %s16
        %v146 = vld [vmem:[%s142] sm:$0xff]
        %v147 = vld [vmem:[%s142 + $0x8] sm:$0xff]
        %v148 = vld [vmem:[%s142 + $0x10] sm:$0xff]
        %v149 = vld [vmem:[%s142 + $0x18] sm:$0xff]
        %v150 = vld [vmem:[%s142 + $0x20] sm:$0xff]
        %v151 = vld [vmem:[%s142 + $0x28] sm:$0xff]
        %v152 = vld [vmem:[%s142 + $0x30] sm:$0xff]
        %v153 = vld [vmem:[%s142 + $0x38] sm:$0xff]
        %v154 = vld [vmem:[%s142 + $0x40] sm:$0xff]
        %v155 = vld [vmem:[%s142 + $0x48] sm:$0xff]
        %v156 = vld [vmem:[%s142 + $0x50] sm:$0xff]
        %v157 = vld [vmem:[%s142 + $0x58] sm:$0xff]
        %v158 = vld [vmem:[%s142 + $0x60] sm:$0xff]
        %v159 = vld [vmem:[%s142 + $0x68] sm:$0xff]
        %v160 = vld [vmem:[%s142 + $0x70] sm:$0xff]
        %v161 = vld [vmem:[%s142 + $0x78] sm:$0xff]
        %v162 = vpack.c.bf16 %v147, %v146
        %v163 = vpack.c.bf16 %v149, %v148
        %v164 = vpack.c.bf16 %v151, %v150
        %v165 = vpack.c.bf16 %v153, %v152
        %v166 = vpack.c.bf16 %v155, %v154
        %v167 = vpack.c.bf16 %v157, %v156
        %v168 = vpack.c.bf16 %v159, %v158
        %v169 = vpack.c.bf16 %v161, %v160
        %v170 = vld [vmem:[%s1] sm:$0xf]
        %v171 = vld [vmem:[%s1 + $0x4] sm:$0xf]
        %v172 = vld [vmem:[%s1 + $0x8] sm:$0xf]
        %v173 = vld [vmem:[%s1 + $0xc] sm:$0xf]
        %v174 = vld [vmem:[%s1 + $0x10] sm:$0xf]
        %v175 = vld [vmem:[%s1 + $0x14] sm:$0xf]
        %v176 = vld [vmem:[%s1 + $0x18] sm:$0xf]
        %v177 = vld [vmem:[%s1 + $0x1c] sm:$0xf]
        %v178 = vld [vmem:[%s1 + $0x20] sm:$0xf]
        %v179 = vld [vmem:[%s1 + $0x24] sm:$0xf]
        %v180 = vld [vmem:[%s1 + $0x28] sm:$0xf]
        %v181 = vld [vmem:[%s1 + $0x2c] sm:$0xf]
        %v182 = vld [vmem:[%s1 + $0x30] sm:$0xf]
        %v183 = vld [vmem:[%s1 + $0x34] sm:$0xf]
        %v184 = vld [vmem:[%s1 + $0x38] sm:$0xf]
        %v185 = vld [vmem:[%s1 + $0x3c] sm:$0xf]
        %v186 = vld [vmem:[%s1 + $0x40] sm:$0xf]
        %v187 = vld [vmem:[%s1 + $0x44] sm:$0xf]
        %v188 = vld [vmem:[%s1 + $0x48] sm:$0xf]
        %v189 = vld [vmem:[%s1 + $0x4c] sm:$0xf]
        %v190 = vld [vmem:[%s1 + $0x50] sm:$0xf]
        %v191 = vld [vmem:[%s1 + $0x54] sm:$0xf]
        %v192 = vld [vmem:[%s1 + $0x58] sm:$0xf]
        %v193 = vld [vmem:[%s1 + $0x5c] sm:$0xf]
        %v194 = vld [vmem:[%s1 + $0x60] sm:$0xf]
        %v195 = vld [vmem:[%s1 + $0x64] sm:$0xf]
        %v196 = vld [vmem:[%s1 + $0x68] sm:$0xf]
        %v197 = vld [vmem:[%s1 + $0x6c] sm:$0xf]
        %v198 = vld [vmem:[%s1 + $0x70] sm:$0xf]
        %v199 = vld [vmem:[%s1 + $0x74] sm:$0xf]
        %v200 = vld [vmem:[%s1 + $0x78] sm:$0xf]
        %v201 = vld [vmem:[%s1 + $0x7c] sm:$0xf]
        %v202 = vld [vmem:[%s1 + $0x80] sm:$0xf]
        %v203 = vld [vmem:[%s1 + $0x84] sm:$0xf]
        %v204 = vld [vmem:[%s1 + $0x88] sm:$0xf]
        %v205 = vunpack.c.l.bf16 %v204
        %v206 = vlaneseq
        %v207 = vshrl.u32 %v206, 7
        %v208 = vsub.s32 0, %v207
        %v209 = vrot.slane %v205, %v208
        %v212 = vunpack.c.l.b16 %v170
        %v213 = vunpack.c.l.b16 %v171
        %v214 = vpack.c.b16 %v213, %v212
        %vm216 = vcmask 130048
        %v218 = vsel %vm216, %v162, 0
        %v221 = vsel %vm216, %v163, 0
        %v224 = vsel %vm216, %v164, 0
        %v227 = vsel %vm216, %v165, 0
        %v230 = vsel %vm216, %v166, 0
        %v233 = vsel %vm216, %v167, 0
        %v236 = vsel %vm216, %v168, 0
        %v239 = vsel %vm216, %v169, 0
        %241 = vmatprep.subr.bf16.mxu0 0
        %242 = vmatpush1.bf16.msra.mxu0 %v214
        %243 = vmatprep.subr.bf16.mxu0 0
        %244 = vmatpush1.bf16.msra.mxu0 0
        %245 = vmatprep.subr.bf16.mxu0 0
        %246 = vmatpush1.bf16.msra.mxu0 0
        %247 = vmatprep.subr.bf16.mxu0 0
        %248 = vmatpush1.bf16.msra.mxu0 0
        %249 = vmatprep.subr.bf16.mxu0 0
        %250 = vmatpush1.bf16.msra.mxu0 0
        %251 = vmatprep.subr.bf16.mxu0 0
        %252 = vmatpush1.bf16.msra.mxu0 0
        %253 = vmatprep.subr.bf16.mxu0 0
        %254 = vmatpush1.bf16.msra.mxu0 0
        %255 = vmatprep.subr.bf16.mxu0 0
        %256 = vmatpush1.bf16.msra.mxu0 0
        %257 = vmatprep.subr.bf16.mxu0 0
        %258 = vmatpush1.bf16.msra.mxu0 0
        %259 = vmatprep.subr.bf16.mxu0 0
        %260 = vmatpush1.bf16.msra.mxu0 0
        %261 = vmatprep.subr.bf16.mxu0 0
        %262 = vmatpush1.bf16.msra.mxu0 0
        %263 = vmatprep.subr.bf16.mxu0 0
        %264 = vmatpush1.bf16.msra.mxu0 0
        %265 = vmatprep.subr.bf16.mxu0 0
        %266 = vmatpush1.bf16.msra.mxu0 0
        %267 = vmatprep.subr.bf16.mxu0 0
        %268 = vmatpush1.bf16.msra.mxu0 0
        %269 = vmatprep.subr.bf16.mxu0 0
        %270 = vmatpush1.bf16.msra.mxu0 0
        %271 = vmatprep.subr.bf16.mxu0 0
        %272 = vmatpush1.bf16.msra.mxu0 0
        %273 = vmatprep.mubr.bf16.mxu0 0
        %274 = vmatmul.mubr.bf16.gmra.mrb[0].mxu0 %v218
        %v275 = vpop.f32.mrb[0].mxu0
        %v276 = vadd.f32 %v209, %v275
        %v277 = vpop.f32.mrb[0].mxu0
        %v278 = vpop.f32.mrb[0].mxu0
        %v279 = vadd.f32 %v209, %v278
        %v280 = vpop.f32.mrb[0].mxu0
        %281 = vmatprep.mubr.bf16.mxu0 0
        %282 = vmatmul.mubr.bf16.gmra.mrb[0].mxu0 %v221
        %v283 = vpop.f32.mrb[0].mxu0
        %v284 = vadd.f32 %v209, %v283
        %v285 = vpop.f32.mrb[0].mxu0
        %v286 = vpop.f32.mrb[0].mxu0
        %v287 = vadd.f32 %v209, %v286
        %v288 = vpop.f32.mrb[0].mxu0
        %289 = vmatprep.mubr.bf16.mxu0 0
        %290 = vmatmul.mubr.bf16.gmra.mrb[0].mxu0 %v224
        %v291 = vpop.f32.mrb[0].mxu0
        %v292 = vadd.f32 %v209, %v291
        %v293 = vpop.f32.mrb[0].mxu0
        %v294 = vpop.f32.mrb[0].mxu0
        %v295 = vadd.f32 %v209, %v294
        %v296 = vpop.f32.mrb[0].mxu0
        %297 = vmatprep.mubr.bf16.mxu0 0
        %298 = vmatmul.mubr.bf16.gmra.mrb[0].mxu0 %v227
        %v299 = vpop.f32.mrb[0].mxu0
        %v300 = vadd.f32 %v209, %v299
        %v301 = vpop.f32.mrb[0].mxu0
        %v302 = vpop.f32.mrb[0].mxu0
        %v303 = vadd.f32 %v209, %v302
        %v304 = vpop.f32.mrb[0].mxu0
        %305 = vmatprep.mubr.bf16.mxu0 0
        %306 = vmatmul.mubr.bf16.gmra.mrb[0].mxu0 %v230
        %v307 = vpop.f32.mrb[0].mxu0
        %v308 = vadd.f32 %v209, %v307
        %v309 = vpop.f32.mrb[0].mxu0
        %v310 = vpop.f32.mrb[0].mxu0
        %v311 = vadd.f32 %v209, %v310
        %v312 = vpop.f32.mrb[0].mxu0
        %313 = vmatprep.mubr.bf16.mxu0 0
        %314 = vmatmul.mubr.bf16.gmra.mrb[0].mxu0 %v233
        %v315 = vpop.f32.mrb[0].mxu0
        %v316 = vadd.f32 %v209, %v315
        %v317 = vpop.f32.mrb[0].mxu0
        %v318 = vpop.f32.mrb[0].mxu0
        %v319 = vadd.f32 %v209, %v318
        %v320 = vpop.f32.mrb[0].mxu0
        %321 = vmatprep.mubr.bf16.mxu0 0
        %322 = vmatmul.mubr.bf16.gmra.mrb[0].mxu0 %v236
        %v323 = vpop.f32.mrb[0].mxu0
        %v324 = vadd.f32 %v209, %v323
        %v325 = vpop.f32.mrb[0].mxu0
        %v326 = vpop.f32.mrb[0].mxu0
        %v327 = vadd.f32 %v209, %v326
        %v328 = vpop.f32.mrb[0].mxu0
        %329 = vmatprep.mubr.bf16.mxu0 0
        %330 = vmatmul.mubr.bf16.gmra.mrb[0].mxu0 %v239
        %v331 = vpop.f32.mrb[0].mxu0
        %v332 = vadd.f32 %v209, %v331
        %v333 = vpop.f32.mrb[0].mxu0
        %v334 = vpop.f32.mrb[0].mxu0
        %v335 = vadd.f32 %v209, %v334
        %v336 = vpop.f32.mrb[0].mxu0
        %337 = vdwg.mxu0
        %v338 = vmax.f32 %v276, 0.0
        %v339 = vmax.f32 %v279, 0.0
        %v340 = vmax.f32 %v284, 0.0
        %v341 = vmax.f32 %v287, 0.0
        %v342 = vmax.f32 %v292, 0.0
        %v343 = vmax.f32 %v295, 0.0
        %v344 = vmax.f32 %v300, 0.0
        %v345 = vmax.f32 %v303, 0.0
        %v346 = vmax.f32 %v308, 0.0
        %v347 = vmax.f32 %v311, 0.0
        %v348 = vmax.f32 %v316, 0.0
        %v349 = vmax.f32 %v319, 0.0
        %v350 = vmax.f32 %v324, 0.0
        %v351 = vmax.f32 %v327, 0.0
        %v352 = vmax.f32 %v332, 0.0
        %v353 = vmax.f32 %v335, 0.0
        %v354 = vpack.c.bf16 %v339, %v338
        %v355 = vpack.c.bf16 %v341, %v340
        %v356 = vpack.c.bf16 %v343, %v342
        %v357 = vpack.c.bf16 %v345, %v344
        %v358 = vpack.c.bf16 %v347, %v346
        %v359 = vpack.c.bf16 %v349, %v348
        %v360 = vpack.c.bf16 %v351, %v350
        %v361 = vpack.c.bf16 %v353, %v352
        %v362 = vlaneseq
        %v363 = vshrl.u32 %v362, 7
        %v364 = vsub.s32 1, %v363
        %v365 = vrot.slane %v205, %v364
        %v382 = vunpack.c.l.b16 %v172
        %v383 = vunpack.c.l.b16 %v173
        %v384 = vunpack.c.l.b16 %v174
        %v385 = vunpack.c.l.b16 %v175
        %v386 = vunpack.c.l.b16 %v176
        %v387 = vunpack.c.l.b16 %v177
        %v388 = vunpack.c.l.b16 %v178
        %v389 = vunpack.c.l.b16 %v179
        %v390 = vunpack.c.l.b16 %v180
        %v391 = vunpack.c.l.b16 %v181
        %v392 = vunpack.c.l.b16 %v182
        %v393 = vunpack.c.l.b16 %v183
        %v394 = vunpack.c.l.b16 %v184
        %v395 = vunpack.c.l.b16 %v185
        %v396 = vunpack.c.l.b16 %v186
        %v397 = vunpack.c.l.b16 %v187
        %v398 = vpack.c.b16 %v383, %v382
        %v399 = vpack.c.b16 %v385, %v384
        %v400 = vpack.c.b16 %v387, %v386
        %v401 = vpack.c.b16 %v389, %v388
        %v402 = vpack.c.b16 %v391, %v390
        %v403 = vpack.c.b16 %v393, %v392
        %v404 = vpack.c.b16 %v395, %v394
        %v405 = vpack.c.b16 %v397, %v396
        %414 = vmatprep.subr.bf16.mxu0 0
        %415 = vmatpush1.bf16.msra.mxu0 %v398
        %416 = vmatprep.subr.bf16.mxu0 0
        %417 = vmatpush1.bf16.msra.mxu0 %v399
        %418 = vmatprep.subr.bf16.mxu0 0
        %419 = vmatpush1.bf16.msra.mxu0 %v400
        %420 = vmatprep.subr.bf16.mxu0 0
        %421 = vmatpush1.bf16.msra.mxu0 %v401
        %422 = vmatprep.subr.bf16.mxu0 0
        %423 = vmatpush1.bf16.msra.mxu0 %v402
        %424 = vmatprep.subr.bf16.mxu0 0
        %425 = vmatpush1.bf16.msra.mxu0 %v403
        %426 = vmatprep.subr.bf16.mxu0 0
        %427 = vmatpush1.bf16.msra.mxu0 %v404
        %428 = vmatprep.subr.bf16.mxu0 0
        %429 = vmatpush1.bf16.msra.mxu0 %v405
        %430 = vmatprep.subr.bf16.mxu0 0
        %431 = vmatpush1.bf16.msra.mxu0 0
        %432 = vmatprep.subr.bf16.mxu0 0
        %433 = vmatpush1.bf16.msra.mxu0 0
        %434 = vmatprep.subr.bf16.mxu0 0
        %435 = vmatpush1.bf16.msra.mxu0 0
        %436 = vmatprep.subr.bf16.mxu0 0
        %437 = vmatpush1.bf16.msra.mxu0 0
        %438 = vmatprep.subr.bf16.mxu0 0
        %439 = vmatpush1.bf16.msra.mxu0 0
        %440 = vmatprep.subr.bf16.mxu0 0
        %441 = vmatpush1.bf16.msra.mxu0 0
        %442 = vmatprep.subr.bf16.mxu0 0
        %443 = vmatpush1.bf16.msra.mxu0 0
        %444 = vmatprep.subr.bf16.mxu0 0
        %445 = vmatpush1.bf16.msra.mxu0 0
        %446 = vmatprep.mubr.bf16.mxu0 0
        %447 = vmatmul.mubr.bf16.gmra.mrb[0].mxu0 %v354
        %v448 = vpop.f32.mrb[0].mxu0
        %v449 = vadd.f32 %v365, %v448
        %v450 = vpop.f32.mrb[0].mxu0
        %v451 = vpop.f32.mrb[0].mxu0
        %v452 = vadd.f32 %v365, %v451
        %v453 = vpop.f32.mrb[0].mxu0
        %454 = vmatprep.mubr.bf16.mxu0 0
        %455 = vmatmul.mubr.bf16.gmra.mrb[0].mxu0 %v355
        %v456 = vpop.f32.mrb[0].mxu0
        %v457 = vadd.f32 %v365, %v456
        %v458 = vpop.f32.mrb[0].mxu0
        %v459 = vpop.f32.mrb[0].mxu0
        %v460 = vadd.f32 %v365, %v459
        %v461 = vpop.f32.mrb[0].mxu0
        %462 = vmatprep.mubr.bf16.mxu0 0
        %463 = vmatmul.mubr.bf16.gmra.mrb[0].mxu0 %v356
        %v464 = vpop.f32.mrb[0].mxu0
        %v465 = vadd.f32 %v365, %v464
        %v466 = vpop.f32.mrb[0].mxu0
        %v467 = vpop.f32.mrb[0].mxu0
        %v468 = vadd.f32 %v365, %v467
        %v469 = vpop.f32.mrb[0].mxu0
        %470 = vmatprep.mubr.bf16.mxu0 0
        %471 = vmatmul.mubr.bf16.gmra.mrb[0].mxu0 %v357
        %v472 = vpop.f32.mrb[0].mxu0
        %v473 = vadd.f32 %v365, %v472
        %v474 = vpop.f32.mrb[0].mxu0
        %v475 = vpop.f32.mrb[0].mxu0
        %v476 = vadd.f32 %v365, %v475
        %v477 = vpop.f32.mrb[0].mxu0
        %478 = vmatprep.mubr.bf16.mxu0 0
        %479 = vmatmul.mubr.bf16.gmra.mrb[0].mxu0 %v358
        %v480 = vpop.f32.mrb[0].mxu0
        %v481 = vadd.f32 %v365, %v480
        %v482 = vpop.f32.mrb[0].mxu0
        %v483 = vpop.f32.mrb[0].mxu0
        %v484 = vadd.f32 %v365, %v483
        %v485 = vpop.f32.mrb[0].mxu0
        %486 = vmatprep.mubr.bf16.mxu0 0
        %487 = vmatmul.mubr.bf16.gmra.mrb[0].mxu0 %v359
        %v488 = vpop.f32.mrb[0].mxu0
        %v489 = vadd.f32 %v365, %v488
        %v490 = vpop.f32.mrb[0].mxu0
        %v491 = vpop.f32.mrb[0].mxu0
        %v492 = vadd.f32 %v365, %v491
        %v493 = vpop.f32.mrb[0].mxu0
        %494 = vmatprep.mubr.bf16.mxu0 0
        %495 = vmatmul.mubr.bf16.gmra.mrb[0].mxu0 %v360
        %v496 = vpop.f32.mrb[0].mxu0
        %v497 = vadd.f32 %v365, %v496
        %v498 = vpop.f32.mrb[0].mxu0
        %v499 = vpop.f32.mrb[0].mxu0
        %v500 = vadd.f32 %v365, %v499
        %v501 = vpop.f32.mrb[0].mxu0
        %502 = vmatprep.mubr.bf16.mxu0 0
        %503 = vmatmul.mubr.bf16.gmra.mrb[0].mxu0 %v361
        %v504 = vpop.f32.mrb[0].mxu0
        %v505 = vadd.f32 %v365, %v504
        %v506 = vpop.f32.mrb[0].mxu0
        %v507 = vpop.f32.mrb[0].mxu0
        %v508 = vadd.f32 %v365, %v507
        %v509 = vpop.f32.mrb[0].mxu0
        %510 = vdwg.mxu0
        %v511 = vmax.f32 %v449, 0.0
        %v512 = vmax.f32 %v452, 0.0
        %v513 = vmax.f32 %v457, 0.0
        %v514 = vmax.f32 %v460, 0.0
        %v515 = vmax.f32 %v465, 0.0
        %v516 = vmax.f32 %v468, 0.0
        %v517 = vmax.f32 %v473, 0.0
        %v518 = vmax.f32 %v476, 0.0
        %v519 = vmax.f32 %v481, 0.0
        %v520 = vmax.f32 %v484, 0.0
        %v521 = vmax.f32 %v489, 0.0
        %v522 = vmax.f32 %v492, 0.0
        %v523 = vmax.f32 %v497, 0.0
        %v524 = vmax.f32 %v500, 0.0
        %v525 = vmax.f32 %v505, 0.0
        %v526 = vmax.f32 %v508, 0.0
        %v527 = vpack.c.bf16 %v512, %v511
        %v528 = vpack.c.bf16 %v514, %v513
        %v529 = vpack.c.bf16 %v516, %v515
        %v530 = vpack.c.bf16 %v518, %v517
        %v531 = vpack.c.bf16 %v520, %v519
        %v532 = vpack.c.bf16 %v522, %v521
        %v533 = vpack.c.bf16 %v524, %v523
        %v534 = vpack.c.bf16 %v526, %v525
        %v535 = vlaneseq
        %v536 = vshrl.u32 %v535, 7
        %v537 = vsub.s32 2, %v536
        %v538 = vrot.slane %v205, %v537
        %v555 = vunpack.c.l.b16 %v188
        %v556 = vunpack.c.l.b16 %v189
        %v557 = vunpack.c.l.b16 %v190
        %v558 = vunpack.c.l.b16 %v191
        %v559 = vunpack.c.l.b16 %v192
        %v560 = vunpack.c.l.b16 %v193
        %v561 = vunpack.c.l.b16 %v194
        %v562 = vunpack.c.l.b16 %v195
        %v563 = vunpack.c.l.b16 %v196
        %v564 = vunpack.c.l.b16 %v197
        %v565 = vunpack.c.l.b16 %v198
        %v566 = vunpack.c.l.b16 %v199
        %v567 = vunpack.c.l.b16 %v200
        %v568 = vunpack.c.l.b16 %v201
        %v569 = vunpack.c.l.b16 %v202
        %v570 = vunpack.c.l.b16 %v203
        %v571 = vpack.c.b16 %v556, %v555
        %v572 = vpack.c.b16 %v558, %v557
        %v573 = vpack.c.b16 %v560, %v559
        %v574 = vpack.c.b16 %v562, %v561
        %v575 = vpack.c.b16 %v564, %v563
        %v576 = vpack.c.b16 %v566, %v565
        %v577 = vpack.c.b16 %v568, %v567
        %v578 = vpack.c.b16 %v570, %v569
        %587 = vmatprep.subr.bf16.mxu0 0
        %588 = vmatpush1.bf16.msra.mxu0 %v571
        %589 = vmatprep.subr.bf16.mxu0 0
        %590 = vmatpush1.bf16.msra.mxu0 %v572
        %591 = vmatprep.subr.bf16.mxu0 0
        %592 = vmatpush1.bf16.msra.mxu0 %v573
        %593 = vmatprep.subr.bf16.mxu0 0
        %594 = vmatpush1.bf16.msra.mxu0 %v574
        %595 = vmatprep.subr.bf16.mxu0 0
        %596 = vmatpush1.bf16.msra.mxu0 %v575
        %597 = vmatprep.subr.bf16.mxu0 0
        %598 = vmatpush1.bf16.msra.mxu0 %v576
        %599 = vmatprep.subr.bf16.mxu0 0
        %600 = vmatpush1.bf16.msra.mxu0 %v577
        %601 = vmatprep.subr.bf16.mxu0 0
        %602 = vmatpush1.bf16.msra.mxu0 %v578
        %603 = vmatprep.subr.bf16.mxu0 0
        %604 = vmatpush1.bf16.msra.mxu0 0
        %605 = vmatprep.subr.bf16.mxu0 0
        %606 = vmatpush1.bf16.msra.mxu0 0
        %607 = vmatprep.subr.bf16.mxu0 0
        %608 = vmatpush1.bf16.msra.mxu0 0
        %609 = vmatprep.subr.bf16.mxu0 0
        %610 = vmatpush1.bf16.msra.mxu0 0
        %611 = vmatprep.subr.bf16.mxu0 0
        %612 = vmatpush1.bf16.msra.mxu0 0
        %613 = vmatprep.subr.bf16.mxu0 0
        %614 = vmatpush1.bf16.msra.mxu0 0
        %615 = vmatprep.subr.bf16.mxu0 0
        %616 = vmatpush1.bf16.msra.mxu0 0
        %617 = vmatprep.subr.bf16.mxu0 0
        %618 = vmatpush1.bf16.msra.mxu0 0
        %619 = vmatprep.mubr.bf16.mxu0 0
        %620 = vmatmul.mubr.bf16.gmra.mrb[0].mxu0 %v527
        %v621 = vpop.f32.mrb[0].mxu0
        %v622 = vadd.f32 %v538, %v621
        %v623 = vpop.f32.mrb[0].mxu0
        %v624 = vpop.f32.mrb[0].mxu0
        %v625 = vadd.f32 %v538, %v624
        %v626 = vpop.f32.mrb[0].mxu0
        %627 = vmatprep.mubr.bf16.mxu0 0
        %628 = vmatmul.mubr.bf16.gmra.mrb[0].mxu0 %v528
        %v629 = vpop.f32.mrb[0].mxu0
        %v630 = vadd.f32 %v538, %v629
        %v631 = vpop.f32.mrb[0].mxu0
        %v632 = vpop.f32.mrb[0].mxu0
        %v633 = vadd.f32 %v538, %v632
        %v634 = vpop.f32.mrb[0].mxu0
        %635 = vmatprep.mubr.bf16.mxu0 0
        %636 = vmatmul.mubr.bf16.gmra.mrb[0].mxu0 %v529
        %v637 = vpop.f32.mrb[0].mxu0
        %v638 = vadd.f32 %v538, %v637
        %v639 = vpop.f32.mrb[0].mxu0
        %v640 = vpop.f32.mrb[0].mxu0
        %v641 = vadd.f32 %v538, %v640
        %v642 = vpop.f32.mrb[0].mxu0
        %643 = vmatprep.mubr.bf16.mxu0 0
        %644 = vmatmul.mubr.bf16.gmra.mrb[0].mxu0 %v530
        %v645 = vpop.f32.mrb[0].mxu0
        %v646 = vadd.f32 %v538, %v645
        %v647 = vpop.f32.mrb[0].mxu0
        %v648 = vpop.f32.mrb[0].mxu0
        %v649 = vadd.f32 %v538, %v648
        %v650 = vpop.f32.mrb[0].mxu0
        %651 = vmatprep.mubr.bf16.mxu0 0
        %652 = vmatmul.mubr.bf16.gmra.mrb[0].mxu0 %v531
        %v653 = vpop.f32.mrb[0].mxu0
        %v654 = vadd.f32 %v538, %v653
        %v655 = vpop.f32.mrb[0].mxu0
        %v656 = vpop.f32.mrb[0].mxu0
        %v657 = vadd.f32 %v538, %v656
        %v658 = vpop.f32.mrb[0].mxu0
        %659 = vmatprep.mubr.bf16.mxu0 0
        %660 = vmatmul.mubr.bf16.gmra.mrb[0].mxu0 %v532
        %v661 = vpop.f32.mrb[0].mxu0
        %v662 = vadd.f32 %v538, %v661
        %v663 = vpop.f32.mrb[0].mxu0
        %v664 = vpop.f32.mrb[0].mxu0
        %v665 = vadd.f32 %v538, %v664
        %v666 = vpop.f32.mrb[0].mxu0
        %667 = vmatprep.mubr.bf16.mxu0 0
        %668 = vmatmul.mubr.bf16.gmra.mrb[0].mxu0 %v533
        %v669 = vpop.f32.mrb[0].mxu0
        %v670 = vadd.f32 %v538, %v669
        %v671 = vpop.f32.mrb[0].mxu0
        %v672 = vpop.f32.mrb[0].mxu0
        %v673 = vadd.f32 %v538, %v672
        %v674 = vpop.f32.mrb[0].mxu0
        %675 = vmatprep.mubr.bf16.mxu0 0
        %676 = vmatmul.mubr.bf16.gmra.mrb[0].mxu0 %v534
        %v677 = vpop.f32.mrb[0].mxu0
        %v678 = vadd.f32 %v538, %v677
        %v679 = vpop.f32.mrb[0].mxu0
        %v680 = vpop.f32.mrb[0].mxu0
        %v681 = vadd.f32 %v538, %v680
        %v682 = vpop.f32.mrb[0].mxu0
        %683 = vdwg.mxu0
        %v684 = vtanh.pop %v622
        %v685 = vtanh.pop %v625
        %v686 = vtanh.pop %v630
        %v687 = vtanh.pop %v633
        %v688 = vtanh.pop %v638
        %v689 = vtanh.pop %v641
        %v690 = vtanh.pop %v646
        %v691 = vtanh.pop %v649
        %v692 = vtanh.pop %v654
        %v693 = vtanh.pop %v657
        %v694 = vtanh.pop %v662
        %v695 = vtanh.pop %v665
        %v696 = vtanh.pop %v670
        %v697 = vtanh.pop %v673
        %v698 = vtanh.pop %v678
        %v699 = vtanh.pop %v681
        %v700 = vmul.f32 %v684, 3.0
        %v701 = vmul.f32 %v685, 3.0
        %v702 = vmul.f32 %v686, 3.0
        %v703 = vmul.f32 %v687, 3.0
        %v704 = vmul.f32 %v688, 3.0
        %v705 = vmul.f32 %v689, 3.0
        %v706 = vmul.f32 %v690, 3.0
        %v707 = vmul.f32 %v691, 3.0
        %v708 = vmul.f32 %v692, 3.0
        %v709 = vmul.f32 %v693, 3.0
        %v710 = vmul.f32 %v694, 3.0
        %v711 = vmul.f32 %v695, 3.0
        %v712 = vmul.f32 %v696, 3.0
        %v713 = vmul.f32 %v697, 3.0
        %v714 = vmul.f32 %v698, 3.0
        %v715 = vmul.f32 %v699, 3.0
        %716 = vst [vmem:[%s137] sm:$0xff] %v700
        %717 = vst [vmem:[%s137 + $0x8] sm:$0xff] %v701
        %718 = vst [vmem:[%s137 + $0x10] sm:$0xff] %v702
        %719 = vst [vmem:[%s137 + $0x18] sm:$0xff] %v703
        %720 = vst [vmem:[%s137 + $0x20] sm:$0xff] %v704
        %721 = vst [vmem:[%s137 + $0x28] sm:$0xff] %v705
        %722 = vst [vmem:[%s137 + $0x30] sm:$0xff] %v706
        %723 = vst [vmem:[%s137 + $0x38] sm:$0xff] %v707
        %724 = vst [vmem:[%s137 + $0x40] sm:$0xff] %v708
        %725 = vst [vmem:[%s137 + $0x48] sm:$0xff] %v709
        %726 = vst [vmem:[%s137 + $0x50] sm:$0xff] %v710
        %727 = vst [vmem:[%s137 + $0x58] sm:$0xff] %v711
        %728 = vst [vmem:[%s137 + $0x60] sm:$0xff] %v712
        %729 = vst [vmem:[%s137 + $0x68] sm:$0xff] %v713
        %730 = vst [vmem:[%s137 + $0x70] sm:$0xff] %v714
        %731 = vst [vmem:[%s137 + $0x78] sm:$0xff] %v715
        %s732 = sand.u32 %s71, 1
        %s733 = scalar_lea.sflag [#allocation3], %s732
        %s734 = sand.u32 %s71, 1
        %s735 = smul.addr %s734, 128
        %s736 = scalar_lea.vmem [#allocation2], %s735
        // Predicated region
        $region29: #{tpu_custom_call.1} parent=27 // pred_check
          %p737 = pneg %p81
        $region30: #{tpu_custom_call.1} parent=27 // pred_check_branch
          %739 = sbr.rel (%p737) target = $region32
        $region31: #{tpu_custom_call.1} parent=27 // pred_region
          %s740 = smul.u32 16, %s16
          %s742 = ssub.s32 2048, 2048
          %743 = vsyncadd %s733, %s742
          %s744 = smul.addr %s740, 128
          %s745 = scalar_lea.hbm %s2, %s744
          %s746 = sshll.u32 %s736, 4
          %s747 = int_to_ptr.vmem [resolvable:$true] %s746
          %752 = dma.vmem_to_hbm [thread:$0]  %s747, 2048, %s745, %s733, 128, 128, 8
        $region32: #{tpu_custom_call.1} parent=27 // pred_fallthru
          _
      $region28: #{tpu_custom_call.1} parent=5 // pred_fallthru
        _
      %p753 = scmp.le.s32.totalorder 2, %s11
      // Predicated region
      $region33: #{tpu_custom_call.1} parent=5 // pred_check
        %p754 = pneg %p753
      $region34: #{tpu_custom_call.1} parent=5 // pred_check_branch
        %756 = sbr.rel (%p754) target = $region36
      $region35: #{tpu_custom_call.1} parent=5 // pred_region
        %s757 = ssub.s32 %s11, 2
        // Predicated region
        $region37: #{tpu_custom_call.1} parent=35 // pred_check
          %p758 = pneg %p87
        $region38: #{tpu_custom_call.1} parent=35 // pred_check_branch
          %760 = sbr.rel (%p758) target = $region40
        $region39: #{tpu_custom_call.1} parent=35 // pred_region
          %s761 = sand.u32 %s72, 1
          %s762 = scalar_lea.sflag [#allocation3], %s761
          %s763 = sand.u32 %s72, 1
          %s764 = smul.addr %s763, 128
          %s765 = scalar_lea.vmem [#allocation2], %s764
          %766 = dma.done %s762, 2048
        $region40: #{tpu_custom_call.1} parent=35 // pred_fallthru
          _
      $region36: #{tpu_custom_call.1} parent=5 // pred_fallthru
        _
    $region6: #{tpu_custom_call.1} parent=1 // loop_footer
      %s15 = sadd.s32 1, %s11
    $region7: #{tpu_custom_call.1} parent=1 // loop_footer_branch
      %10 = sbr.rel target = $region3
    $region8: #{tpu_custom_call.1} parent=1 // loop_exit
      _
    %767 = vsyncpa [#allocation3], 1
    %s768 = scalar_lea.sflag [#allocation3], 1
    %769 = vsyncpa %s768, 1

</llo_original>
